<compile_context>
chip_gen: v6e
topology: v6e:2x2x1
jax: 0.10.0
libtpu: 0.0.40
codegen_flags: <defaults>
</compile_context>

<pallas_src>
import jax
import jax.numpy as jnp
from jax.experimental import pallas as pl
from jax.experimental.pallas import tpu as pltpu


# ----------------------------------------------------------------------------
# Minimal cfg stand-in (mirrors cfg.clone(), cfg.AMP, cfg.MODEL.FC_INIT_STD)
# ----------------------------------------------------------------------------
class _ModelCfg:
    def __init__(self, fc_init_std):
        self.FC_INIT_STD = fc_init_std


class Cfg:
    def __init__(self, amp=False, fc_init_std=0.01):
        self.AMP = amp
        self.MODEL = _ModelCfg(fc_init_std)

    def clone(self):
        return Cfg(self.AMP, self.MODEL.FC_INIT_STD)


# ----------------------------------------------------------------------------
# Pallas kernel: the forward_core dispatch path of NetABC (identity)
# ----------------------------------------------------------------------------
def _identity_kernel(x_ref, o_ref):
    # forward_core is abstract in NetABC -> identity pass-through.
    # No bf16 cast on the AMP path: autocast does not change the dtype of
    # precision-neutral ops, so the result must stay bit-exact.
    o_ref[...] = x_ref[...]


_LANE_CANDIDATES = (2048, 1024, 512, 256, 128)
# Per-array tile budget. With input + output each double-buffered this is
# 4 * 4 MiB = 16 MiB of VMEM -> safe on v5e/v6e (128 MiB) and v7x (64 MiB).
_TILE_BYTES = 4 << 20


def _pick_layout(n_elems, itemsize):
    """Pick a lane-dense (rows, lane) view and a row-block size."""
    lane = None
    for cand in _LANE_CANDIDATES:
        if n_elems % cand == 0:
            lane = cand
            break
    if lane is None:
        return None  # not lane-alignable without padding
    rows = n_elems // lane
    max_rows = max(1, _TILE_BYTES // (lane * itemsize))
    if rows <= max_rows:
        return rows, lane, rows  # single full-extent block per grid axis
    # Largest divisor of `rows` that is a multiple of 8 (sublane) and fits.
    row_block = None
    d = 8
    while d <= max_rows:
        if rows % d == 0:
            row_block = d
        d += 8
    if row_block is None:
        # Fall back to one full-extent block (always legal: block == dims).
        return rows, lane, rows
    return rows, lane, row_block


def netabc_forward(x, *, amp: bool):
    """NetABC.forward(x): (optional autocast) + forward_core(x).

    forward_core is abstract -> identity dispatch. `amp` is accepted for
    interface parity; autocast is a no-op for a precision-neutral identity.
    """
    del amp  # precision-neutral op: autocast would not alter the tensor
    orig_shape = x.shape
    n = int(x.size)
    itemsize = jnp.dtype(x.dtype).itemsize

    cost = pl.CostEstimate(
        flops=0, transcendentals=0, bytes_accessed=2 * n * itemsize
    )
    cparams = pltpu.CompilerParams(
        dimension_semantics=("parallel",),
        vmem_limit_bytes=32 << 20,
    )

    layout = _pick_layout(n, itemsize)
    if layout is None:
        # Element count not a multiple of 128: single full-extent block.
        x2 = x.reshape(1, n)
        y2 = pl.pallas_call(
            _identity_kernel,
            out_shape=jax.ShapeDtypeStruct((1, n), x.dtype),
            grid=(1,),
            in_specs=[pl.BlockSpec((1, n), lambda i: (0, 0))],
            out_specs=pl.BlockSpec((1, n), lambda i: (0, 0)),
            input_output_aliases={0: 0},
            compiler_params=cparams,
            cost_estimate=cost,
        )(x2)
        return y2.reshape(orig_shape)

    rows, lane, row_block = layout
    x2 = x.reshape(rows, lane)
    y2 = pl.pallas_call(
        _identity_kernel,
        out_shape=jax.ShapeDtypeStruct((rows, lane), x.dtype),
        grid=(rows // row_block,),
        in_specs=[pl.BlockSpec((row_block, lane), lambda i: (i, 0))],
        out_specs=pl.BlockSpec((row_block, lane), lambda i: (i, 0)),
        input_output_aliases={0: 0},
        compiler_params=cparams,
        cost_estimate=cost,
    )(x2)
    return y2.reshape(orig_shape)


# ----------------------------------------------------------------------------
# JAX-side NetABC analogue
# ----------------------------------------------------------------------------
class NetABCPallas:
    def __init__(self, cfg, auto_init=True):
        self.cfg = cfg.clone()
        self.set_processing_mode()
        self._create_net()
        if auto_init:
            self.init_weights()

    def set_processing_mode(self):
        # TODO(synk): abstract in the reference module; no concrete behavior.
        pass

    def _create_net(self):
        # TODO(synk): abstract in the reference module; no layers to create.
        self.params = {}

    def init_weights(self):
        # init_weights(self, cfg.MODEL.FC_INIT_STD): deterministic normal init
        # with the configured std for any FC weights a subclass would create.
        key = jax.random.PRNGKey(0)
        std = self.cfg.MODEL.FC_INIT_STD
        self.params = {
            name: std * jax.random.normal(
                jax.random.fold_in(key, i), p.shape, p.dtype
            )
            for i, (name, p) in enumerate(self.params.items())
        }

    def forward_core(self, x):
        return netabc_forward(x, amp=self.cfg.AMP)

    def forward(self, x):
        return self.forward_core(x)


if __name__ == "__main__":
    key = jax.random.PRNGKey(0)
    x = jax.random.normal(key, (2, 4, 16, 16), dtype=jnp.float32)

    net = NetABCPallas(Cfg(amp=False, fc_init_std=0.01))
    y = net.forward(x)
    jax.block_until_ready(y)
    assert y.shape == x.shape and y.dtype == x.dtype
    assert jnp.array_equal(y, x)

    net_amp = NetABCPallas(Cfg(amp=True, fc_init_std=0.01))
    y_amp = net_amp.forward(x)
    jax.block_until_ready(y_amp)
    assert y_amp.shape == x.shape and y_amp.dtype == x.dtype
    assert jnp.array_equal(y_amp, x)  # bit-exact: no bf16 round-trip anymore

    print("KERNEL_OK")
</pallas_src>

<mosaic_0001>
module attributes {stable_mosaic.version = 11 : i64} {
  func.func @_identity_kernel(%arg0: i32, %arg1: memref<1x2048xf32, #tpu.memory_space<vmem>>, %arg2: memref<1x2048xf32, #tpu.memory_space<vmem>>) attributes {dimension_semantics = [#tpu.dimension_semantics<parallel>], iteration_bounds = array<i64: 1>, scalar_prefetch = 0 : i64, scratch_operands = 0 : i64, tpu.core_type = #tpu.core_type<tc>, window_params = [{transform_indices = @transform_0, window_bounds = array<i64: 1, 2048>}, {transform_indices = @transform_1, window_bounds = array<i64: 1, 2048>}]} {
    %c0 = arith.constant 0 : index
    %c0_0 = arith.constant 0 : index
    %0 = vector.load %arg1[%c0, %c0_0] : memref<1x2048xf32, #tpu.memory_space<vmem>>, vector<1x2048xf32>
    %c0_1 = arith.constant 0 : index
    %c0_2 = arith.constant 0 : index
    %1 = vector.load %arg2[%c0_1, %c0_2] : memref<1x2048xf32, #tpu.memory_space<vmem>>, vector<1x2048xf32>
    tpu.vector_store %arg2[%c0_1, %c0_2], %0 {strides = array<i32>} : memref<1x2048xf32, #tpu.memory_space<vmem>>, vector<1x2048xf32>,
    return
  }
  func.func @transform_0(%arg0: i32) -> (i32, i32) {
    %c0_i32 = arith.constant 0 : i32
    %c0_i32_0 = arith.constant 0 : i32
    return %arg0, %c0_i32 : i32, i32
  }
  func.func @transform_1(%arg0: i32) -> (i32, i32) {
    %c0_i32 = arith.constant 0 : i32
    %c0_i32_0 = arith.constant 0 : i32
    return %arg0, %c0_i32 : i32, i32
  }
}

</mosaic_0001>

<llo_original>
// kernel: tpu_custom_call.1
$region0: #{tpu_custom_call.1}
  #allocation0 [shape = 'u32[]', space=smem, size = 0x4, offset = 0x4, fixed_abs, tag = 'smem constant byte address 0x4 - core index']
  #allocation1 [shape = 'u32[144,128]{1,0:T(1,128)}', space=vmem, size = 0x12000, scoped, tag = 'internal scratch']
  %s0 = inlined_call_operand.hbm [shape: f32[1,2048], index: 0, kind: input, shape index: {}, may-alias: {0,1}]
  %s1 = inlined_call_operand.hbm [shape: f32[1,2048], index: 1, kind: output, shape index: {}, may-alias: {0,1}]
  %s2 = sld [smem:[#allocation0]]
  $region18: #{tpu_custom_call.1} parent=0
    _
  %s4 = ssub.s32 1, %s2
  %s5 = scalar_select 0, %s4, %s2
  $region1: #{tpu_custom_call.1} parent=0
    #allocation2 [shape = 'u8[8192]{0}', space=vmem, size = 0x2000, scoped, tag = 'input window, operand 0, single buffered']
    #allocation3 [shape = 's32[1]{0}', space=sflag, size = 0x4, scoped, tag = 'scoped memory for tpu_custom_call.1']
    #allocation4 [shape = 's32[1]{0}', space=sflag, size = 0x4, scoped, tag = 'scoped memory for tpu_custom_call.1']
    #allocation5 [shape = 'u8[8192]{0}', space=vmem, size = 0x2000, scoped, tag = 'output window, operand 0, single buffered']
    %6 = vsyncpa [#allocation3], 0
    %7 = vsyncpa [#allocation4], 0
    // Predicated region
    $region2: #{tpu_custom_call.1} parent=1 // pred_check
      _
    $region3: #{tpu_custom_call.1} parent=1 // pred_check_branch
      %9 = sbr.rel (0) target = $region5
    $region4: #{tpu_custom_call.1} parent=1 // pred_region
      %s11 = ssub.s32 256, 256
      %12 = vsyncadd [#allocation3], %s11
      %s14 = sshll.u32 [#allocation2], 4
      %s15 = int_to_ptr.vmem [resolvable:$true] %s14
      %17 = dma.hbm_to_vmem [thread:$0]  %s0, 256, %s15, [#allocation3]
    $region5: #{tpu_custom_call.1} parent=1 // pred_fallthru
      _
    // Predicated region
    $region6: #{tpu_custom_call.1} parent=1 // pred_check
      _
    $region7: #{tpu_custom_call.1} parent=1 // pred_check_branch
      %19 = sbr.rel (0) target = $region9
    $region8: #{tpu_custom_call.1} parent=1 // pred_region
      %20 = dma.done [#allocation3], 256
    $region9: #{tpu_custom_call.1} parent=1 // pred_fallthru
      _
    %v21 = vld [vmem:[#allocation2] sm:$0xff]
    %v22 = vld [vmem:[#allocation2 + $0x8] sm:$0xff]
    %23 = vst [vmem:[#allocation5] sm:$0xff] %v21
    %24 = vst [vmem:[#allocation5 + $0x8] sm:$0xff] %v22
    // Predicated region
    $region10: #{tpu_custom_call.1} parent=1 // pred_check
      _
    $region11: #{tpu_custom_call.1} parent=1 // pred_check_branch
      %26 = sbr.rel (0) target = $region13
    $region12: #{tpu_custom_call.1} parent=1 // pred_region
      %s28 = ssub.s32 256, 256
      %29 = vsyncadd [#allocation4], %s28
      %s31 = sshll.u32 [#allocation5], 4
      %s32 = int_to_ptr.vmem [resolvable:$true] %s31
      %34 = dma.vmem_to_hbm [thread:$0]  %s32, 256, %s1, [#allocation4]
    $region13: #{tpu_custom_call.1} parent=1 // pred_fallthru
      _
    // Predicated region
    $region14: #{tpu_custom_call.1} parent=1 // pred_check
      _
    $region15: #{tpu_custom_call.1} parent=1 // pred_check_branch
      %36 = sbr.rel (0) target = $region17
    $region16: #{tpu_custom_call.1} parent=1 // pred_region
      %37 = dma.done [#allocation4], 256
    $region17: #{tpu_custom_call.1} parent=1 // pred_fallthru
      _
    %38 = vsyncpa [#allocation3], 1
    %39 = vsyncpa [#allocation4], 1

</llo_original>
